<compile_context>
chip_gen: v6e
topology: v6e:2x2x1
jax: 0.10.0
libtpu: 0.0.40
codegen_flags: <defaults>
</compile_context>

<pallas_src>
import jax
import jax.numpy as jnp
from jax.experimental import pallas as pl
from jax.experimental.pallas import tpu as pltpu


def _round_up_128(n):
    return -(-n // 128) * 128


def attn_decoder_forward(params, token, h0, c0, encoder_outputs):
    """Mirrors AttnDecoder_layer_LSTM.forward (num_layers=1, eval mode)."""
    H = params["hidden_size"]
    O = params["output_size"]
    L = encoder_outputs.shape[0]

    # ---------------- host-side glue (pure layout / one-time packing) ----------------
    emb = params["embedding"][token].reshape(1, H)
    h0_2d = h0.reshape(1, H)
    c0_2d = c0.reshape(1, H)
    state_slab = jnp.concatenate([emb, h0_2d, c0_2d], axis=0)          # (3, H)

    # folded biases + v packed into one small slab (one row each, lane 0 aligned)
    Wvec = max(4 * H, H, O)
    def pad_row_to(x, w):
        return jnp.pad(x, ((0, 0), (0, w - x.shape[1])))
    vec_slab = jnp.concatenate([
        pad_row_to(params["Wb"] + params["Ub"], Wvec),                 # row 0: attention bias
        pad_row_to(params["bc"], Wvec),                                # row 1: attn_combine bias
        pad_row_to(params["bih"] + params["bhh"], Wvec),               # row 2: LSTM gate bias
        pad_row_to(params["bo2"], Wvec),                               # row 3: out2 bias
        pad_row_to(params["v"].reshape(1, H), Wvec),                   # row 4: attention vector v
    ], axis=0)                                                         # (5, Wvec)

    # K-concatenated weights packed into one slab, each in a 128-lane-aligned band
    W_lstm = jnp.concatenate([params["Wih"], params["Whh"]], axis=0)   # (2H, 4H)
    W_attn = jnp.concatenate([params["Ww"], params["Uw"]], axis=0)     # (2H, H)
    W_c = params["Wc"]                                                 # (2H, H)
    W_o2 = params["Wo2"]                                               # (2H, O)

    off_lstm = 0
    off_attn = off_lstm + _round_up_128(4 * H)
    off_c = off_attn + _round_up_128(H)
    off_o2 = off_c + _round_up_128(H)
    Wslab = off_o2 + _round_up_128(O)
    w_slab = jnp.concatenate([
        pad_row_to(W_lstm, _round_up_128(4 * H)),
        pad_row_to(W_attn, _round_up_128(H)),
        pad_row_to(W_c, _round_up_128(H)),
        pad_row_to(W_o2, _round_up_128(O)),
    ], axis=1)                                                         # (2H, Wslab)

    Wout = max(O, H, L, 128)
    OUT_ROWS = 8

    # ---------------- the kernel (closure over static sizes) ----------------
    def kernel(enc_ref, state_ref, vec_ref, w_ref, out_ref):
        enc = enc_ref[...]                                  # (L, H)
        emb_v = state_ref[0:1, :]                           # (1, H)  (dropout = identity, eval)
        h0_v = state_ref[1:2, :]                            # (1, H)
        c0_v = state_ref[2:3, :]                            # (1, H)

        b_attn = vec_ref[0:1, 0:H]
        b_c = vec_ref[1:2, 0:H]
        b_lstm = vec_ref[2:3, 0:4 * H]
        b_o2 = vec_ref[3:4, 0:O]
        v_row = vec_ref[4:5, 0:H]

        Wl = w_ref[:, off_lstm:off_lstm + 4 * H]            # (2H, 4H)
        Wa = w_ref[:, off_attn:off_attn + H]                # (2H, H)
        Wc_ = w_ref[:, off_c:off_c + H]                     # (2H, H)
        Wo = w_ref[:, off_o2:off_o2 + O]                    # (2H, O)

        # ---- additive attention: tanh([h0|enc] @ [Ww;Uw] + b) . v, softmax over L ----
        h0_b = jnp.broadcast_to(h0_v, (L, H))
        qk = jnp.concatenate([h0_b, enc], axis=1)                                    # (L, 2H)
        pre = jnp.tanh(jnp.dot(qk, Wa, preferred_element_type=jnp.float32) + b_attn)  # (L, H)
        scores = jnp.sum(pre * v_row, axis=1, keepdims=True)                         # (L, 1) VPU+XLU

        m = jnp.max(scores, axis=0, keepdims=True)
        p = jnp.exp(scores - m)
        denom = jnp.sum(p, axis=0, keepdims=True)                                    # (1, 1)
        r = pl.reciprocal(denom, approx=True)
        r = r * (2.0 - denom * r)                            # one Newton step -> ~full precision
        attn_col = p * r                                                              # (L, 1)

        # attn_applied = attn^T @ enc  via sublane-weighted reduce (no MXU push)
        attn_applied = jnp.sum(attn_col * enc, axis=0, keepdims=True)                 # (1, H)

        # ---- attn_combine: Linear(2H -> H) on cat(embedded, attn_applied), ReLU ----
        comb_in = jnp.concatenate([emb_v, attn_applied], axis=1)                      # (1, 2H)
        x = jnp.maximum(
            jnp.dot(comb_in, Wc_, preferred_element_type=jnp.float32) + b_c, 0.0)     # (1, H)

        # ---- single-step single-layer LSTM (torch gate order i, f, g, o) ----
        gate_in = jnp.concatenate([x, h0_v], axis=1)                                  # (1, 2H)
        gates = jnp.dot(gate_in, Wl, preferred_element_type=jnp.float32) + b_lstm     # (1, 4H)
        lane = jax.lax.broadcasted_iota(jnp.int32, (1, 4 * H), 1)
        is_g = (lane >= 2 * H) & (lane < 3 * H)
        # single full-vreg tanh: sigmoid(x)=0.5*(tanh(0.5x)+1) for i/f/o lanes, tanh for g lanes
        t = jnp.tanh(jnp.where(is_g, gates, 0.5 * gates))
        act = jnp.where(is_g, t, 0.5 * t + 0.5)
        i_g = act[:, 0:H]
        f_g = act[:, H:2 * H]
        g_g = act[:, 2 * H:3 * H]
        o_g = act[:, 3 * H:4 * H]
        c1 = f_g * c0_v + i_g * g_g
        h1 = o_g * jnp.tanh(c1)

        # ---- out2: Linear(2H -> O) on cat(h1, attn_applied), then log_softmax ----
        out_in = jnp.concatenate([h1, attn_applied], axis=1)                          # (1, 2H)
        logits = jnp.dot(out_in, Wo, preferred_element_type=jnp.float32) + b_o2       # (1, O)
        lm = jnp.max(logits, axis=1, keepdims=True)
        sh = logits - lm
        lse = jnp.log(jnp.sum(jnp.exp(sh), axis=1, keepdims=True))
        logp = sh - lse

        # attention weights as a (1, L) row: column -> row via iota-select (XLU reduce)
        rid = jax.lax.broadcasted_iota(jnp.int32, (L, L), 0)
        cid = jax.lax.broadcasted_iota(jnp.int32, (L, L), 1)
        attn_row = jnp.sum(jnp.where(rid == cid, attn_col, 0.0),
                           axis=0, keepdims=True)                                     # (1, L)

        # ---- pack all outputs into one lane-dense slab; single unmasked store ----
        def pad_row(x):
            padw = Wout - x.shape[1]
            if padw == 0:
                return x
            return jnp.concatenate([x, jnp.zeros((1, padw), jnp.float32)], axis=1)

        slab = jnp.concatenate([
            pad_row(logp),                                   # row 0: log-softmax output
            pad_row(h1),                                     # row 1: new hidden
            pad_row(c1),                                     # row 2: new cell
            pad_row(attn_row),                               # row 3: attention weights
            jnp.zeros((OUT_ROWS - 4, Wout), jnp.float32),    # rows 4-7: padding
        ], axis=0)
        out_ref[...] = slab

    vmem = pl.BlockSpec(memory_space=pltpu.MemorySpace.VMEM)
    out_slab = pl.pallas_call(
        kernel,
        out_shape=jax.ShapeDtypeStruct((OUT_ROWS, Wout), jnp.float32),
        in_specs=[vmem, vmem, vmem, vmem],
        out_specs=vmem,
    )(encoder_outputs, state_slab, vec_slab, w_slab)

    out = out_slab[0:1, 0:O]
    h1 = out_slab[1:2, 0:H]
    c1 = out_slab[2:3, 0:H]
    attn_weights = out_slab[3:4, 0:L]
    new_hidden = (h1.reshape(1, 1, H), c1.reshape(1, 1, H))
    return out, new_hidden, attn_weights


def reference_forward(params, token, h0, c0, enc):
    """Pure-JAX reference mirroring the torch forward semantics."""
    H = params["hidden_size"]
    emb = params["embedding"][token].reshape(1, H)
    h0_2d = h0.reshape(1, H)
    c0_2d = c0.reshape(1, H)

    wq = h0_2d @ params["Ww"] + params["Wb"]
    uv = enc @ params["Uw"] + params["Ub"]
    scores = jnp.tanh(wq + uv) @ params["v"]                  # (L,)
    aw = jax.nn.softmax(scores)[None, :]                      # (1, L)
    attn_applied = aw @ enc                                   # (1, H)

    comb = jnp.concatenate([emb, attn_applied], axis=1) @ params["Wc"] + params["bc"]
    x = jax.nn.relu(comb)

    gates = x @ params["Wih"] + params["bih"] + h0_2d @ params["Whh"] + params["bhh"]
    i_g = jax.nn.sigmoid(gates[:, :H])
    f_g = jax.nn.sigmoid(gates[:, H:2 * H])
    g_g = jnp.tanh(gates[:, 2 * H:3 * H])
    o_g = jax.nn.sigmoid(gates[:, 3 * H:])
    c1 = f_g * c0_2d + i_g * g_g
    h1 = o_g * jnp.tanh(c1)

    logits = jnp.concatenate([h1, attn_applied], axis=1) @ params["Wo2"] + params["bo2"]
    out = jax.nn.log_softmax(logits, axis=1)
    return out, h1, c1, aw


if __name__ == "__main__":
    H, O, L = 32, 40, 8          # hidden_size, output_size, max_length ; num_layers = 1
    key = jax.random.PRNGKey(0)
    ks = jax.random.split(key, 18)

    def u(k, shape, scale=0.1):
        return jax.random.uniform(k, shape, jnp.float32, -scale, scale)

    params = {
        "hidden_size": H,
        "output_size": O,
        "embedding": u(ks[0], (O, H), 1.0),
        "Ww": u(ks[1], (H, H)), "Wb": u(ks[2], (1, H)),
        "Uw": u(ks[3], (H, H)), "Ub": u(ks[4], (1, H)),
        "v": jax.random.uniform(ks[5], (H,), jnp.float32, 0.0, 1.0),   # torch.rand(H)
        "Wc": u(ks[6], (2 * H, H)), "bc": u(ks[7], (1, H)),
        "Wih": u(ks[8], (H, 4 * H)), "Whh": u(ks[9], (H, 4 * H)),
        "bih": u(ks[10], (1, 4 * H)), "bhh": u(ks[11], (1, 4 * H)),
        "Wo2": u(ks[12], (2 * H, O)), "bo2": u(ks[13], (1, O)),
    }

    token = jnp.array(3, dtype=jnp.int32)                 # decoder input token id
    h0 = u(ks[14], (1, 1, H))                             # (num_layers=1, batch=1, H)
    c0 = u(ks[15], (1, 1, H))
    encoder_outputs = u(ks[16], (L, H), 1.0)              # (max_length, H)

    out, (h1, c1), attn_w = attn_decoder_forward(params, token, h0, c0, encoder_outputs)
    jax.block_until_ready((out, h1, c1, attn_w))

    out_r, h1_r, c1_r, aw_r = reference_forward(params, token, h0, c0, encoder_outputs)
    assert jnp.allclose(out, out_r, atol=1e-4, rtol=1e-4)
    assert jnp.allclose(h1.reshape(1, H), h1_r, atol=1e-4, rtol=1e-4)
    assert jnp.allclose(c1.reshape(1, H), c1_r, atol=1e-4, rtol=1e-4)
    assert jnp.allclose(attn_w, aw_r, atol=1e-4, rtol=1e-4)

    print("KERNEL_OK")
</pallas_src>

<mosaic_0001>
module attributes {stable_mosaic.version = 11 : i64} {
  func.func @kernel(%arg0: memref<8x32xf32, #tpu.memory_space<vmem>>, %arg1: memref<3x32xf32, #tpu.memory_space<vmem>>, %arg2: memref<5x128xf32, #tpu.memory_space<vmem>>, %arg3: memref<64x512xf32, #tpu.memory_space<vmem>>, %arg4: memref<8x128xf32, #tpu.memory_space<vmem>>) attributes {dimension_semantics = [], scalar_prefetch = 0 : i64, scratch_operands = 0 : i64, tpu.core_type = #tpu.core_type<tc>} {
    %c0 = arith.constant 0 : index
    %c0_0 = arith.constant 0 : index
    %0 = vector.load %arg0[%c0, %c0_0] : memref<8x32xf32, #tpu.memory_space<vmem>>, vector<8x32xf32>
    %c0_1 = arith.constant 0 : index
    %c0_2 = arith.constant 0 : index
    %1 = vector.load %arg1[%c0_1, %c0_2] : memref<3x32xf32, #tpu.memory_space<vmem>>, vector<1x32xf32>
    %c1 = arith.constant 1 : index
    %c0_3 = arith.constant 0 : index
    %2 = vector.load %arg1[%c1, %c0_3] : memref<3x32xf32, #tpu.memory_space<vmem>>, vector<1x32xf32>
    %c2 = arith.constant 2 : index
    %c0_4 = arith.constant 0 : index
    %3 = vector.load %arg1[%c2, %c0_4] : memref<3x32xf32, #tpu.memory_space<vmem>>, vector<1x32xf32>
    %c0_5 = arith.constant 0 : index
    %c0_6 = arith.constant 0 : index
    %4 = vector.load %arg2[%c0_5, %c0_6] : memref<5x128xf32, #tpu.memory_space<vmem>>, vector<1x32xf32>
    %c1_7 = arith.constant 1 : index
    %c0_8 = arith.constant 0 : index
    %5 = vector.load %arg2[%c1_7, %c0_8] : memref<5x128xf32, #tpu.memory_space<vmem>>, vector<1x32xf32>
    %c2_9 = arith.constant 2 : index
    %c0_10 = arith.constant 0 : index
    %6 = vector.load %arg2[%c2_9, %c0_10] : memref<5x128xf32, #tpu.memory_space<vmem>>, vector<1x128xf32>
    %c3 = arith.constant 3 : index
    %c0_11 = arith.constant 0 : index
    %7 = vector.load %arg2[%c3, %c0_11] : memref<5x128xf32, #tpu.memory_space<vmem>>, vector<1x40xf32>
    %c4 = arith.constant 4 : index
    %c0_12 = arith.constant 0 : index
    %8 = vector.load %arg2[%c4, %c0_12] : memref<5x128xf32, #tpu.memory_space<vmem>>, vector<1x32xf32>
    %c0_13 = arith.constant 0 : index
    %c0_14 = arith.constant 0 : index
    %9 = vector.load %arg3[%c0_13, %c0_14] : memref<64x512xf32, #tpu.memory_space<vmem>>, vector<64x128xf32>
    %c0_15 = arith.constant 0 : index
    %c128 = arith.constant 128 : index
    %10 = vector.load %arg3[%c0_15, %c128] : memref<64x512xf32, #tpu.memory_space<vmem>>, vector<64x32xf32>
    %c0_16 = arith.constant 0 : index
    %c256 = arith.constant 256 : index
    %11 = vector.load %arg3[%c0_16, %c256] : memref<64x512xf32, #tpu.memory_space<vmem>>, vector<64x32xf32>
    %c0_17 = arith.constant 0 : index
    %c384 = arith.constant 384 : index
    %12 = vector.load %arg3[%c0_17, %c384] : memref<64x512xf32, #tpu.memory_space<vmem>>, vector<64x40xf32>
    %13 = vector.shape_cast %2 : vector<1x32xf32> to vector<1x32xf32>
    %14 = vector.broadcast %13 : vector<1x32xf32> to vector<8x32xf32>
    %15 = tpu.concatenate %14, %0 in 1 : vector<8x32xf32>, vector<8x32xf32> -> vector<8x64xf32>
    %cst = arith.constant dense<0.000000e+00> : vector<8x32xf32>
    %16 = tpu.matmul %15, %10, %cst {dimension_numbers = #tpu.dot_dimension_numbers<[1], [0], [0], [1], [0, 0, 1, 1], [], []>} : vector<8x64xf32>, vector<64x32xf32>, vector<8x32xf32> -> vector<8x32xf32>
    %17 = vector.broadcast %4 : vector<1x32xf32> to vector<8x32xf32>
    %18 = arith.addf %16, %17 : vector<8x32xf32>
    %19 = math.tanh %18 : vector<8x32xf32>
    %20 = vector.broadcast %8 : vector<1x32xf32> to vector<8x32xf32>
    %21 = arith.mulf %19, %20 : vector<8x32xf32>
    %cst_18 = arith.constant dense<0.000000e+00> : vector<8xf32>
    %22 = vector.multi_reduction <add>, %21, %cst_18 [1] : vector<8x32xf32> to vector<8xf32>
    %23 = vector.shape_cast %22 : vector<8xf32> to vector<8x1xf32>
    %cst_19 = arith.constant dense<0xFF800000> : vector<1xf32>
    %24 = vector.multi_reduction <maximumf>, %23, %cst_19 [0] : vector<8x1xf32> to vector<1xf32>
    %25 = vector.shape_cast %24 : vector<1xf32> to vector<1x1xf32>
    %26 = vector.broadcast %25 : vector<1x1xf32> to vector<8x1xf32>
    %27 = arith.subf %23, %26 : vector<8x1xf32>
    %28 = math.exp %27 : vector<8x1xf32>
    %cst_20 = arith.constant dense<0.000000e+00> : vector<1xf32>
    %29 = vector.multi_reduction <add>, %28, %cst_20 [0] : vector<8x1xf32> to vector<1xf32>
    %30 = vector.shape_cast %29 : vector<1xf32> to vector<1x1xf32>
    %31 = tpu.reciprocal %30 {approx = true} : vector<1x1xf32> -> vector<1x1xf32>
    %32 = arith.mulf %30, %31 : vector<1x1xf32>
    %cst_21 = arith.constant 2.000000e+00 : f32
    %33 = vector.broadcast %cst_21 : f32 to vector<1x1xf32>
    %34 = arith.subf %33, %32 : vector<1x1xf32>
    %35 = arith.mulf %31, %34 : vector<1x1xf32>
    %36 = vector.broadcast %35 : vector<1x1xf32> to vector<8x1xf32>
    %37 = arith.mulf %28, %36 : vector<8x1xf32>
    %38 = vector.broadcast %37 : vector<8x1xf32> to vector<8x32xf32>
    %39 = arith.mulf %38, %0 : vector<8x32xf32>
    %cst_22 = arith.constant dense<0.000000e+00> : vector<32xf32>
    %40 = vector.multi_reduction <add>, %39, %cst_22 [0] : vector<8x32xf32> to vector<32xf32>
    %41 = vector.shape_cast %40 : vector<32xf32> to vector<1x32xf32>
    %42 = tpu.concatenate %1, %41 in 1 : vector<1x32xf32>, vector<1x32xf32> -> vector<1x64xf32>
    %cst_23 = arith.constant dense<0.000000e+00> : vector<1x32xf32>
    %43 = tpu.matmul %42, %11, %cst_23 {dimension_numbers = #tpu.dot_dimension_numbers<[1], [0], [0], [1], [0, 0, 1, 1], [], []>} : vector<1x64xf32>, vector<64x32xf32>, vector<1x32xf32> -> vector<1x32xf32>
    %44 = arith.addf %43, %5 : vector<1x32xf32>
    %cst_24 = arith.constant 0.000000e+00 : f32
    %45 = vector.broadcast %cst_24 : f32 to vector<1x32xf32>
    %46 = arith.maximumf %44, %45 : vector<1x32xf32>
    %47 = tpu.concatenate %46, %2 in 1 : vector<1x32xf32>, vector<1x32xf32> -> vector<1x64xf32>
    %cst_25 = arith.constant dense<0.000000e+00> : vector<1x128xf32>
    %48 = tpu.matmul %47, %9, %cst_25 {dimension_numbers = #tpu.dot_dimension_numbers<[1], [0], [0], [1], [0, 0, 1, 1], [], []>} : vector<1x64xf32>, vector<64x128xf32>, vector<1x128xf32> -> vector<1x128xf32>
    %49 = arith.addf %48, %6 : vector<1x128xf32>
    %50 = tpu.iota {dimensions = array<i32: 1>} : vector<1x128xi32>
    %c64_i32 = arith.constant 64 : i32
    %51 = vector.broadcast %c64_i32 : i32 to vector<1x128xi32>
    %52 = arith.cmpi sge, %50, %51 : vector<1x128xi32>
    %c96_i32 = arith.constant 96 : i32
    %53 = vector.broadcast %c96_i32 : i32 to vector<1x128xi32>
    %54 = arith.cmpi slt, %50, %53 : vector<1x128xi32>
    %55 = arith.andi %52, %54 : vector<1x128xi1>
    %cst_26 = arith.constant 5.000000e-01 : f32
    %56 = vector.broadcast %cst_26 : f32 to vector<1x128xf32>
    %57 = arith.mulf %56, %49 : vector<1x128xf32>
    %58 = arith.select %55, %49, %57 : vector<1x128xi1>, vector<1x128xf32>
    %59 = math.tanh %58 : vector<1x128xf32>
    %cst_27 = arith.constant 5.000000e-01 : f32
    %60 = vector.broadcast %cst_27 : f32 to vector<1x128xf32>
    %61 = arith.mulf %60, %59 : vector<1x128xf32>
    %cst_28 = arith.constant 5.000000e-01 : f32
    %62 = vector.broadcast %cst_28 : f32 to vector<1x128xf32>
    %63 = arith.addf %61, %62 : vector<1x128xf32>
    %64 = arith.select %55, %59, %63 : vector<1x128xi1>, vector<1x128xf32>
    %65 = vector.extract_strided_slice %64 {offsets = [0, 0], sizes = [1, 32], strides = [1, 1]} : vector<1x128xf32> to vector<1x32xf32>
    %66 = vector.extract_strided_slice %64 {offsets = [0, 32], sizes = [1, 32], strides = [1, 1]} : vector<1x128xf32> to vector<1x32xf32>
    %67 = vector.extract_strided_slice %64 {offsets = [0, 64], sizes = [1, 32], strides = [1, 1]} : vector<1x128xf32> to vector<1x32xf32>
    %68 = vector.extract_strided_slice %64 {offsets = [0, 96], sizes = [1, 32], strides = [1, 1]} : vector<1x128xf32> to vector<1x32xf32>
    %69 = arith.mulf %66, %3 : vector<1x32xf32>
    %70 = arith.mulf %65, %67 : vector<1x32xf32>
    %71 = arith.addf %69, %70 : vector<1x32xf32>
    %72 = math.tanh %71 : vector<1x32xf32>
    %73 = arith.mulf %68, %72 : vector<1x32xf32>
    %74 = tpu.concatenate %73, %41 in 1 : vector<1x32xf32>, vector<1x32xf32> -> vector<1x64xf32>
    %cst_29 = arith.constant dense<0.000000e+00> : vector<1x40xf32>
    %75 = tpu.matmul %74, %12, %cst_29 {dimension_numbers = #tpu.dot_dimension_numbers<[1], [0], [0], [1], [0, 0, 1, 1], [], []>} : vector<1x64xf32>, vector<64x40xf32>, vector<1x40xf32> -> vector<1x40xf32>
    %76 = arith.addf %75, %7 : vector<1x40xf32>
    %cst_30 = arith.constant dense<0xFF800000> : vector<1xf32>
    %77 = vector.multi_reduction <maximumf>, %76, %cst_30 [1] : vector<1x40xf32> to vector<1xf32>
    %78 = vector.shape_cast %77 : vector<1xf32> to vector<1x1xf32>
    %79 = vector.broadcast %78 : vector<1x1xf32> to vector<1x40xf32>
    %80 = arith.subf %76, %79 : vector<1x40xf32>
    %81 = math.exp %80 : vector<1x40xf32>
    %cst_31 = arith.constant dense<0.000000e+00> : vector<1xf32>
    %82 = vector.multi_reduction <add>, %81, %cst_31 [1] : vector<1x40xf32> to vector<1xf32>
    %83 = vector.shape_cast %82 : vector<1xf32> to vector<1x1xf32>
    %84 = math.log %83 : vector<1x1xf32>
    %85 = vector.broadcast %84 : vector<1x1xf32> to vector<1x40xf32>
    %86 = arith.subf %80, %85 : vector<1x40xf32>
    %87 = tpu.iota {dimensions = array<i32: 0>} : vector<8x8xi32>
    %88 = tpu.iota {dimensions = array<i32: 1>} : vector<8x8xi32>
    %89 = arith.cmpi eq, %87, %88 : vector<8x8xi32>
    %cst_32 = arith.constant 0.000000e+00 : f32
    %90 = vector.shape_cast %37 : vector<8x1xf32> to vector<8x1xf32>
    %91 = vector.broadcast %90 : vector<8x1xf32> to vector<8x8xf32>
    %92 = vector.broadcast %cst_32 : f32 to vector<8x8xf32>
    %93 = arith.select %89, %91, %92 : vector<8x8xi1>, vector<8x8xf32>
    %cst_33 = arith.constant dense<0.000000e+00> : vector<8xf32>
    %94 = vector.multi_reduction <add>, %93, %cst_33 [0] : vector<8x8xf32> to vector<8xf32>
    %95 = vector.shape_cast %94 : vector<8xf32> to vector<1x8xf32>
    %cst_34 = arith.constant 0.000000e+00 : f32
    %96 = vector.broadcast %cst_34 : f32 to vector<1x88xf32>
    %97 = tpu.concatenate %86, %96 in 1 : vector<1x40xf32>, vector<1x88xf32> -> vector<1x128xf32>
    %cst_35 = arith.constant 0.000000e+00 : f32
    %98 = vector.broadcast %cst_35 : f32 to vector<1x96xf32>
    %99 = tpu.concatenate %73, %98 in 1 : vector<1x32xf32>, vector<1x96xf32> -> vector<1x128xf32>
    %cst_36 = arith.constant 0.000000e+00 : f32
    %100 = vector.broadcast %cst_36 : f32 to vector<1x96xf32>
    %101 = tpu.concatenate %71, %100 in 1 : vector<1x32xf32>, vector<1x96xf32> -> vector<1x128xf32>
    %cst_37 = arith.constant 0.000000e+00 : f32
    %102 = vector.broadcast %cst_37 : f32 to vector<1x120xf32>
    %103 = tpu.concatenate %95, %102 in 1 : vector<1x8xf32>, vector<1x120xf32> -> vector<1x128xf32>
    %cst_38 = arith.constant 0.000000e+00 : f32
    %104 = vector.broadcast %cst_38 : f32 to vector<4x128xf32>
    %105 = tpu.concatenate %97, %99, %101, %103, %104 in 0 : vector<1x128xf32>, vector<1x128xf32>, vector<1x128xf32>, vector<1x128xf32>, vector<4x128xf32> -> vector<8x128xf32>
    %c0_39 = arith.constant 0 : index
    %c0_40 = arith.constant 0 : index
    %106 = vector.load %arg4[%c0_39, %c0_40] : memref<8x128xf32, #tpu.memory_space<vmem>>, vector<8x128xf32>
    tpu.vector_store %arg4[%c0_39, %c0_40], %105 {strides = array<i32>} : memref<8x128xf32, #tpu.memory_space<vmem>>, vector<8x128xf32>,
    return
  }
}

</mosaic_0001>

<llo_original>
// kernel: tpu_custom_call.1
$region0: #{tpu_custom_call.1}
  #allocation0 [shape = 'u32[]', space=smem, size = 0x4, offset = 0x4, fixed_abs, tag = 'smem constant byte address 0x4 - core index']
  #allocation1 [shape = 'u32[144,128]{1,0:T(1,128)}', space=vmem, size = 0x12000, scoped, tag = 'internal scratch']
  %s0 = inlined_call_operand.hbm [shape: f32[8,32], index: 0, kind: input, shape index: {}]
  %s1 = inlined_call_operand.hbm [shape: f32[3,32], index: 1, kind: input, shape index: {}]
  %s2 = inlined_call_operand.hbm [shape: f32[5,128], index: 2, kind: input, shape index: {}]
  %s3 = inlined_call_operand.hbm [shape: f32[64,512], index: 3, kind: input, shape index: {}]
  %s4 = inlined_call_operand.hbm [shape: f32[8,128], index: 4, kind: output, shape index: {}]
  %s5 = sld [smem:[#allocation0]]
  $region42: #{tpu_custom_call.1} parent=0
    _
  %s7 = ssub.s32 1, %s5
  %s8 = scalar_select 0, %s7, %s5
  $region1: #{tpu_custom_call.1} parent=0
    #allocation2 [shape = 'u8[4096]{0}', space=vmem, size = 0x1000, scoped, tag = 'input window, operand 0, single buffered']
    #allocation3 [shape = 's32[1]{0}', space=sflag, size = 0x4, scoped, tag = 'scoped memory for tpu_custom_call.1']
    #allocation4 [shape = 's32[1]{0}', space=sflag, size = 0x4, scoped, tag = 'scoped memory for tpu_custom_call.1']
    #allocation5 [shape = 'u8[2048]{0}', space=vmem, size = 0x800, scoped, tag = 'input window, operand 1, single buffered']
    #allocation6 [shape = 's32[1]{0}', space=sflag, size = 0x4, scoped, tag = 'scoped memory for tpu_custom_call.1']
    #allocation7 [shape = 'u8[4096]{0}', space=vmem, size = 0x1000, scoped, tag = 'input window, operand 2, single buffered']
    #allocation8 [shape = 'u8[131072]{0}', space=vmem, size = 0x20000, scoped, tag = 'input window, operand 3, single buffered']
    #allocation9 [shape = 's32[1]{0}', space=sflag, size = 0x4, scoped, tag = 'scoped memory for tpu_custom_call.1']
    #allocation10 [shape = 'u8[4096]{0}', space=vmem, size = 0x1000, scoped, tag = 'output window, operand 0, single buffered']
    %9 = vsyncpa [#allocation3], 0
    %10 = vsyncpa [#allocation6], 0
    %11 = vsyncpa [#allocation9], 0
    %12 = vsyncpa [#allocation4], 0
    // Predicated region
    $region2: #{tpu_custom_call.1} parent=1 // pred_check
      _
    $region3: #{tpu_custom_call.1} parent=1 // pred_check_branch
      %14 = sbr.rel (0) target = $region5
    $region4: #{tpu_custom_call.1} parent=1 // pred_region
      %s16 = ssub.s32 128, 128
      %17 = vsyncadd [#allocation3], %s16
      %s19 = sshll.u32 [#allocation2], 4
      %s20 = int_to_ptr.vmem [resolvable:$true] %s19
      %22 = dma.hbm_to_vmem [thread:$0]  %s0, 128, %s20, [#allocation3]
    $region5: #{tpu_custom_call.1} parent=1 // pred_fallthru
      _
    // Predicated region
    $region6: #{tpu_custom_call.1} parent=1 // pred_check
      _
    $region7: #{tpu_custom_call.1} parent=1 // pred_check_branch
      %24 = sbr.rel (0) target = $region9
    $region8: #{tpu_custom_call.1} parent=1 // pred_region
      %s26 = ssub.s32 64, 64
      %27 = vsyncadd [#allocation6], %s26
      %s29 = sshll.u32 [#allocation5], 4
      %s30 = int_to_ptr.vmem [resolvable:$true] %s29
      %32 = dma.hbm_to_vmem [thread:$0]  %s1, 64, %s30, [#allocation6]
    $region9: #{tpu_custom_call.1} parent=1 // pred_fallthru
      _
    // Predicated region
    $region10: #{tpu_custom_call.1} parent=1 // pred_check
      _
    $region11: #{tpu_custom_call.1} parent=1 // pred_check_branch
      %34 = sbr.rel (0) target = $region13
    $region12: #{tpu_custom_call.1} parent=1 // pred_region
      %s36 = ssub.s32 128, 128
      %37 = vsyncadd [#allocation6], %s36
      %s39 = sshll.u32 [#allocation7], 4
      %s40 = int_to_ptr.vmem [resolvable:$true] %s39
      %42 = dma.hbm_to_vmem [thread:$0]  %s2, 128, %s40, [#allocation6]
    $region13: #{tpu_custom_call.1} parent=1 // pred_fallthru
      _
    // Predicated region
    $region14: #{tpu_custom_call.1} parent=1 // pred_check
      _
    $region15: #{tpu_custom_call.1} parent=1 // pred_check_branch
      %44 = sbr.rel (0) target = $region17
    $region16: #{tpu_custom_call.1} parent=1 // pred_region
      %s46 = ssub.s32 4096, 4096
      %47 = vsyncadd [#allocation9], %s46
      %s48 = sshll.u32 [#allocation8], 4
      %s49 = int_to_ptr.vmem [resolvable:$true] %s48
      %54 = dma.hbm_to_vmem [thread:$0]  %s3, 4096, %s49, [#allocation9], 512, 512, 32
    $region17: #{tpu_custom_call.1} parent=1 // pred_fallthru
      _
    // Predicated region
    $region18: #{tpu_custom_call.1} parent=1 // pred_check
      _
    $region19: #{tpu_custom_call.1} parent=1 // pred_check_branch
      %56 = sbr.rel (0) target = $region21
    $region20: #{tpu_custom_call.1} parent=1 // pred_region
      %57 = dma.done [#allocation3], 128
    $region21: #{tpu_custom_call.1} parent=1 // pred_fallthru
      _
    // Predicated region
    $region22: #{tpu_custom_call.1} parent=1 // pred_check
      _
    $region23: #{tpu_custom_call.1} parent=1 // pred_check_branch
      %59 = sbr.rel (0) target = $region25
    $region24: #{tpu_custom_call.1} parent=1 // pred_region
      %60 = dma.done [#allocation6], 64
    $region25: #{tpu_custom_call.1} parent=1 // pred_fallthru
      _
    // Predicated region
    $region26: #{tpu_custom_call.1} parent=1 // pred_check
      _
    $region27: #{tpu_custom_call.1} parent=1 // pred_check_branch
      %62 = sbr.rel (0) target = $region29
    $region28: #{tpu_custom_call.1} parent=1 // pred_region
      %63 = dma.done [#allocation6], 128
    $region29: #{tpu_custom_call.1} parent=1 // pred_fallthru
      _
    // Predicated region
    $region30: #{tpu_custom_call.1} parent=1 // pred_check
      _
    $region31: #{tpu_custom_call.1} parent=1 // pred_check_branch
      %65 = sbr.rel (0) target = $region33
    $region32: #{tpu_custom_call.1} parent=1 // pred_region
      %66 = dma.done [#allocation9], 4096
    $region33: #{tpu_custom_call.1} parent=1 // pred_fallthru
      _
    %v67 = vld [vmem:[#allocation2] sm:$0xff]
    %v68 = vld [vmem:[#allocation5] sm:$0x1]
    %v69 = vld [vmem:[#allocation5 + $0x1] sm:$0x1]
    %v70 = vld [vmem:[#allocation5 + $0x2] sm:$0x1]
    %v71 = vld [vmem:[#allocation7] sm:$0x1]
    %v72 = vld [vmem:[#allocation7 + $0x1] sm:$0x1]
    %v73 = vld [vmem:[#allocation7 + $0x2] sm:$0x1]
    %v74 = vld [vmem:[#allocation7 + $0x3] sm:$0x1]
    %v75 = vld [vmem:[#allocation7 + $0x4] sm:$0x1]
    %v76 = vld [vmem:[#allocation8] sm:$0xff]
    %v77 = vld [vmem:[#allocation8 + $0x20] sm:$0xff]
    %v78 = vld [vmem:[#allocation8 + $0x40] sm:$0xff]
    %v79 = vld [vmem:[#allocation8 + $0x60] sm:$0xff]
    %v80 = vld [vmem:[#allocation8 + $0x80] sm:$0xff]
    %v81 = vld [vmem:[#allocation8 + $0xa0] sm:$0xff]
    %v82 = vld [vmem:[#allocation8 + $0xc0] sm:$0xff]
    %v83 = vld [vmem:[#allocation8 + $0xe0] sm:$0xff]
    %v84 = vld [vmem:[#allocation8 + $0x8] sm:$0xff]
    %v85 = vld [vmem:[#allocation8 + $0x28] sm:$0xff]
    %v86 = vld [vmem:[#allocation8 + $0x48] sm:$0xff]
    %v87 = vld [vmem:[#allocation8 + $0x68] sm:$0xff]
    %v88 = vld [vmem:[#allocation8 + $0x88] sm:$0xff]
    %v89 = vld [vmem:[#allocation8 + $0xa8] sm:$0xff]
    %v90 = vld [vmem:[#allocation8 + $0xc8] sm:$0xff]
    %v91 = vld [vmem:[#allocation8 + $0xe8] sm:$0xff]
    %v92 = vld [vmem:[#allocation8 + $0x10] sm:$0xff]
    %v93 = vld [vmem:[#allocation8 + $0x30] sm:$0xff]
    %v94 = vld [vmem:[#allocation8 + $0x50] sm:$0xff]
    %v95 = vld [vmem:[#allocation8 + $0x70] sm:$0xff]
    %v96 = vld [vmem:[#allocation8 + $0x90] sm:$0xff]
    %v97 = vld [vmem:[#allocation8 + $0xb0] sm:$0xff]
    %v98 = vld [vmem:[#allocation8 + $0xd0] sm:$0xff]
    %v99 = vld [vmem:[#allocation8 + $0xf0] sm:$0xff]
    %v100 = vld [vmem:[#allocation8 + $0x18] sm:$0xff]
    %v101 = vld [vmem:[#allocation8 + $0x38] sm:$0xff]
    %v102 = vld [vmem:[#allocation8 + $0x58] sm:$0xff]
    %v103 = vld [vmem:[#allocation8 + $0x78] sm:$0xff]
    %v104 = vld [vmem:[#allocation8 + $0x98] sm:$0xff]
    %v105 = vld [vmem:[#allocation8 + $0xb8] sm:$0xff]
    %v106 = vld [vmem:[#allocation8 + $0xd8] sm:$0xff]
    %v107 = vld [vmem:[#allocation8 + $0xf8] sm:$0xff]
    %v108 = vlaneseq
    %v109 = vshrl.u32 %v108, 7
    %v110 = vsub.s32 0, %v109
    %v111 = vrot.slane %v69, %v110
    %113 = vrot.lane.b32.xlu0 %v67, 32
    %v114 = vpop.permute.xlu0 %113
    %vm116 = vcmask 261120
    %v117 = vsel %vm116, %v111, %v114
    %v118 = vlaneseq
    %v119 = vshrl.u32 %v118, 7
    %v120 = vsub.s32 0, %v119
    %v121 = vrot.slane %v71, %v120
    %vm122 = vcmask 523264
    %v124 = vsel %vm122, %v117, 0
    %126 = vmatprep.subr.mxu0 0.0
    %127 = vmatpush1.msra.mxu0 0.0
    %128 = vmatprep.subr.mxu0 0.0
    %129 = vmatpush1.msra.mxu0 0.0
    %130 = vmatprep.subr.mxu0 0.0
    %131 = vmatpush1.msra.mxu0 0.0
    %132 = vmatprep.subr.mxu0 0.0
    %133 = vmatpush1.msra.mxu0 0.0
    %134 = vmatprep.subr.mxu0 0.0
    %135 = vmatpush1.msra.mxu0 0.0
    %136 = vmatprep.subr.mxu0 0.0
    %137 = vmatpush1.msra.mxu0 0.0
    %138 = vmatprep.subr.mxu0 0.0
    %139 = vmatpush1.msra.mxu0 0.0
    %140 = vmatprep.subr.mxu0 0.0
    %141 = vmatpush1.msra.mxu0 0.0
    %142 = vmatprep.subr.mxu0 0.0
    %143 = vmatpush1.msra.mxu0 %v91
    %144 = vmatprep.subr.mxu0 0.0
    %145 = vmatpush1.msra.mxu0 %v90
    %146 = vmatprep.subr.mxu0 0.0
    %147 = vmatpush1.msra.mxu0 %v89
    %148 = vmatprep.subr.mxu0 0.0
    %149 = vmatpush1.msra.mxu0 %v88
    %150 = vmatprep.subr.mxu0 0.0
    %151 = vmatpush1.msra.mxu0 %v87
    %152 = vmatprep.subr.mxu0 0.0
    %153 = vmatpush1.msra.mxu0 %v86
    %154 = vmatprep.subr.mxu0 0.0
    %155 = vmatpush1.msra.mxu0 %v85
    %156 = vmatprep.subr.mxu0 0.0
    %157 = vmatpush1.msra.mxu0 %v84
    %158 = vmatprep.subr.mxu0 0.0
    %159 = vmatpush2.msra.mxu0 0.0
    %160 = vmatprep.subr.mxu0 0.0
    %161 = vmatpush2.msra.mxu0 0.0
    %162 = vmatprep.subr.mxu0 0.0
    %163 = vmatpush2.msra.mxu0 0.0
    %164 = vmatprep.subr.mxu0 0.0
    %165 = vmatpush2.msra.mxu0 0.0
    %166 = vmatprep.subr.mxu0 0.0
    %167 = vmatpush2.msra.mxu0 0.0
    %168 = vmatprep.subr.mxu0 0.0
    %169 = vmatpush2.msra.mxu0 0.0
    %170 = vmatprep.subr.mxu0 0.0
    %171 = vmatpush2.msra.mxu0 0.0
    %172 = vmatprep.subr.mxu0 0.0
    %173 = vmatpush2.msra.mxu0 0.0
    %174 = vmatprep.subr.mxu0 0.0
    %175 = vmatpush2.msra.mxu0 0.0
    %176 = vmatprep.subr.mxu0 0.0
    %177 = vmatpush2.msra.mxu0 0.0
    %178 = vmatprep.subr.mxu0 0.0
    %179 = vmatpush2.msra.mxu0 0.0
    %180 = vmatprep.subr.mxu0 0.0
    %181 = vmatpush2.msra.mxu0 0.0
    %182 = vmatprep.subr.mxu0 0.0
    %183 = vmatpush2.msra.mxu0 0.0
    %184 = vmatprep.subr.mxu0 0.0
    %185 = vmatpush2.msra.mxu0 0.0
    %186 = vmatprep.subr.mxu0 0.0
    %187 = vmatpush2.msra.mxu0 0.0
    %188 = vmatprep.subr.mxu0 0.0
    %189 = vmatpush2.msra.mxu0 0.0
    %190 = vmatprep.mubr.f32.mxu0 0.0
    %191 = vmatmul.mubr.f32.gmra.mxu0 %v124
    %v192 = vpop.f32.mrf.mxu0
    %v193 = vadd.f32 %v121, %v192
    %v194 = vpop.f32.mrf.mxu0
    %195 = vdwg.mxu0
    %v196 = vtanh.pop %v193
    %v197 = vlaneseq
    %v198 = vshrl.u32 %v197, 7
    %v199 = vsub.s32 0, %v198
    %v200 = vrot.slane %v75, %v199
    %v201 = vmul.f32 %v196, %v200
    %v202 = vsel %vm116, %v201, 0.0
    %203 = vadd.xlane.f32.xlu0 %v202
    %v204 = vpop.xlane.xlu0 %203
    %v205 = vrot.slane %v204, 4
    %v206 = vmax.f32 %v204, %v205
    %v207 = vrot.slane %v206, 2
    %v208 = vmax.f32 %v206, %v207
    %v209 = vrot.slane %v208, 1
    %v210 = vmax.f32 %v208, %v209
    %v211 = vsub.f32 %v204, %v210
    %v212 = vmul.f32 %v211, 1.442695
    %v213 = vpow.pop %v212
    %v214 = vrot.slane %v213, 4
    %v215 = vadd.f32 %v213, %v214
    %v216 = vrot.slane %v215, 2
    %v217 = vadd.f32 %v215, %v216
    %v218 = vrot.slane %v217, 1
    %v219 = vadd.f32 %v217, %v218
    %v220 = vrcp.pop %v219
    %v221 = vmul.f32 %v219, %v220
    %v222 = vsub.f32 2.0, %v221
    %v223 = vmul.f32 %v220, %v222
    %v224 = vmul.f32 %v213, %v223
    %v225 = vmul.f32 %v224, %v67
    %v226 = vsel %vm116, %v225, 0.0
    %v227 = vrot.slane %v226, 4
    %v228 = vadd.f32 %v226, %v227
    %v229 = vrot.slane %v228, 2
    %v230 = vadd.f32 %v228, %v229
    %v231 = vrot.slane %v230, 1
    %v232 = vadd.f32 %v230, %v231
    %234 = vrot.lane.b32.xlu0 %v232, 32
    %v235 = vpop.permute.xlu0 %234
    %v237 = vsel %vm116, %v68, %v235
    %v239 = vsel %vm122, %v237, 0
    %241 = vmatprep.subr.mxu0 0.0
    %242 = vmatpush1.msra.mxu0 0.0
    %243 = vmatprep.subr.mxu0 0.0
    %244 = vmatpush1.msra.mxu0 0.0
    %245 = vmatprep.subr.mxu0 0.0
    %246 = vmatpush1.msra.mxu0 0.0
    %247 = vmatprep.subr.mxu0 0.0
    %248 = vmatpush1.msra.mxu0 0.0
    %249 = vmatprep.subr.mxu0 0.0
    %250 = vmatpush1.msra.mxu0 0.0
    %251 = vmatprep.subr.mxu0 0.0
    %252 = vmatpush1.msra.mxu0 0.0
    %253 = vmatprep.subr.mxu0 0.0
    %254 = vmatpush1.msra.mxu0 0.0
    %255 = vmatprep.subr.mxu0 0.0
    %256 = vmatpush1.msra.mxu0 0.0
    %257 = vmatprep.subr.mxu0 0.0
    %258 = vmatpush1.msra.mxu0 %v99
    %259 = vmatprep.subr.mxu0 0.0
    %260 = vmatpush1.msra.mxu0 %v98
    %261 = vmatprep.subr.mxu0 0.0
    %262 = vmatpush1.msra.mxu0 %v97
    %263 = vmatprep.subr.mxu0 0.0
    %264 = vmatpush1.msra.mxu0 %v96
    %265 = vmatprep.subr.mxu0 0.0
    %266 = vmatpush1.msra.mxu0 %v95
    %267 = vmatprep.subr.mxu0 0.0
    %268 = vmatpush1.msra.mxu0 %v94
    %269 = vmatprep.subr.mxu0 0.0
    %270 = vmatpush1.msra.mxu0 %v93
    %271 = vmatprep.subr.mxu0 0.0
    %272 = vmatpush1.msra.mxu0 %v92
    %273 = vmatprep.subr.mxu0 0.0
    %274 = vmatpush2.msra.mxu0 0.0
    %275 = vmatprep.subr.mxu0 0.0
    %276 = vmatpush2.msra.mxu0 0.0
    %277 = vmatprep.subr.mxu0 0.0
    %278 = vmatpush2.msra.mxu0 0.0
    %279 = vmatprep.subr.mxu0 0.0
    %280 = vmatpush2.msra.mxu0 0.0
    %281 = vmatprep.subr.mxu0 0.0
    %282 = vmatpush2.msra.mxu0 0.0
    %283 = vmatprep.subr.mxu0 0.0
    %284 = vmatpush2.msra.mxu0 0.0
    %285 = vmatprep.subr.mxu0 0.0
    %286 = vmatpush2.msra.mxu0 0.0
    %287 = vmatprep.subr.mxu0 0.0
    %288 = vmatpush2.msra.mxu0 0.0
    %289 = vmatprep.subr.mxu0 0.0
    %290 = vmatpush2.msra.mxu0 0.0
    %291 = vmatprep.subr.mxu0 0.0
    %292 = vmatpush2.msra.mxu0 0.0
    %293 = vmatprep.subr.mxu0 0.0
    %294 = vmatpush2.msra.mxu0 0.0
    %295 = vmatprep.subr.mxu0 0.0
    %296 = vmatpush2.msra.mxu0 0.0
    %297 = vmatprep.subr.mxu0 0.0
    %298 = vmatpush2.msra.mxu0 0.0
    %299 = vmatprep.subr.mxu0 0.0
    %300 = vmatpush2.msra.mxu0 0.0
    %301 = vmatprep.subr.mxu0 0.0
    %302 = vmatpush2.msra.mxu0 0.0
    %303 = vmatprep.subr.mxu0 0.0
    %304 = vmatpush2.msra.mxu0 0.0
    %305 = vmatprep.mubr.f32.mxu0 0.0
    %306 = vmatmul.mubr.f32.gmra.mxu0 %v239
    %v307 = vpop.f32.mrf.mxu0
    %v308 = vadd.f32 %v72, %v307
    %v309 = vpop.f32.mrf.mxu0
    %310 = vdwg.mxu0
    %v311 = vmax.f32 %v308, 0.0
    %313 = vrot.lane.b32.xlu0 %v69, 32
    %v314 = vpop.permute.xlu0 %313
    %v316 = vsel %vm116, %v311, %v314
    %v318 = vsel %vm122, %v316, 0
    %320 = vmatprep.subr.mxu0 0.0
    %321 = vmatpush1.msra.mxu0 0.0
    %322 = vmatprep.subr.mxu0 0.0
    %323 = vmatpush1.msra.mxu0 0.0
    %324 = vmatprep.subr.mxu0 0.0
    %325 = vmatpush1.msra.mxu0 0.0
    %326 = vmatprep.subr.mxu0 0.0
    %327 = vmatpush1.msra.mxu0 0.0
    %328 = vmatprep.subr.mxu0 0.0
    %329 = vmatpush1.msra.mxu0 0.0
    %330 = vmatprep.subr.mxu0 0.0
    %331 = vmatpush1.msra.mxu0 0.0
    %332 = vmatprep.subr.mxu0 0.0
    %333 = vmatpush1.msra.mxu0 0.0
    %334 = vmatprep.subr.mxu0 0.0
    %335 = vmatpush1.msra.mxu0 0.0
    %336 = vmatprep.subr.mxu0 0.0
    %337 = vmatpush1.msra.mxu0 %v83
    %338 = vmatprep.subr.mxu0 0.0
    %339 = vmatpush1.msra.mxu0 %v82
    %340 = vmatprep.subr.mxu0 0.0
    %341 = vmatpush1.msra.mxu0 %v81
    %342 = vmatprep.subr.mxu0 0.0
    %343 = vmatpush1.msra.mxu0 %v80
    %344 = vmatprep.subr.mxu0 0.0
    %345 = vmatpush1.msra.mxu0 %v79
    %346 = vmatprep.subr.mxu0 0.0
    %347 = vmatpush1.msra.mxu0 %v78
    %348 = vmatprep.subr.mxu0 0.0
    %349 = vmatpush1.msra.mxu0 %v77
    %350 = vmatprep.subr.mxu0 0.0
    %351 = vmatpush1.msra.mxu0 %v76
    %352 = vmatprep.subr.mxu0 0.0
    %353 = vmatpush2.msra.mxu0 0.0
    %354 = vmatprep.subr.mxu0 0.0
    %355 = vmatpush2.msra.mxu0 0.0
    %356 = vmatprep.subr.mxu0 0.0
    %357 = vmatpush2.msra.mxu0 0.0
    %358 = vmatprep.subr.mxu0 0.0
    %359 = vmatpush2.msra.mxu0 0.0
    %360 = vmatprep.subr.mxu0 0.0
    %361 = vmatpush2.msra.mxu0 0.0
    %362 = vmatprep.subr.mxu0 0.0
    %363 = vmatpush2.msra.mxu0 0.0
    %364 = vmatprep.subr.mxu0 0.0
    %365 = vmatpush2.msra.mxu0 0.0
    %366 = vmatprep.subr.mxu0 0.0
    %367 = vmatpush2.msra.mxu0 0.0
    %368 = vmatprep.subr.mxu0 0.0
    %369 = vmatpush2.msra.mxu0 0.0
    %370 = vmatprep.subr.mxu0 0.0
    %371 = vmatpush2.msra.mxu0 0.0
    %372 = vmatprep.subr.mxu0 0.0
    %373 = vmatpush2.msra.mxu0 0.0
    %374 = vmatprep.subr.mxu0 0.0
    %375 = vmatpush2.msra.mxu0 0.0
    %376 = vmatprep.subr.mxu0 0.0
    %377 = vmatpush2.msra.mxu0 0.0
    %378 = vmatprep.subr.mxu0 0.0
    %379 = vmatpush2.msra.mxu0 0.0
    %380 = vmatprep.subr.mxu0 0.0
    %381 = vmatpush2.msra.mxu0 0.0
    %382 = vmatprep.subr.mxu0 0.0
    %383 = vmatpush2.msra.mxu0 0.0
    %384 = vmatprep.mubr.f32.mxu0 0.0
    %385 = vmatmul.mubr.f32.gmra.mxu0 %v318
    %v386 = vpop.f32.mrf.mxu0
    %v387 = vadd.f32 %v73, %v386
    %v388 = vpop.f32.mrf.mxu0
    %389 = vdwg.mxu0
    %v390 = vlaneseq
    %v391 = vand.u32 %v390, 127
    %vm392 = vcmp.ge.s32.totalorder %v391, 64
    %vm393 = vcmp.lt.s32.totalorder %v391, 96
    %vm394 = vmand %vm392, %vm393
    %v395 = vmul.f32 %v387, 0.5
    %v396 = vsel %vm394, %v387, %v395
    %v397 = vtanh.pop %v396
    %v398 = vmul.f32 %v397, 0.5
    %v399 = vadd.f32 %v398, 0.5
    %v400 = vsel %vm394, %v397, %v399
    %402 = vrot.lane.b32.xlu0 %v70, 32
    %v403 = vpop.permute.xlu0 %402
    %v405 = vmul.f32 %v400, %v403
    %407 = vrot.lane.b32.xlu0 %v400, 64
    %v408 = vpop.permute.xlu0 %407
    %v410 = vmul.f32 %v400, %v408
    %412 = vrot.lane.b32.xlu0 %v410, 32
    %v413 = vpop.permute.xlu0 %412
    %v415 = vadd.f32 %v405, %v413
    %v416 = vtanh.pop %v415
    %418 = vrot.lane.b32.xlu0 %v416, 64
    %v419 = vpop.permute.xlu0 %418
    %v421 = vmul.f32 %v400, %v419
    %423 = vrot.lane.b32.xlu0 %v421, 32
    %v424 = vpop.permute.xlu0 %423
    %v426 = vsel %vm116, %v424, %v235
    %v428 = vsel %vm122, %v426, 0
    %430 = vmatprep.subr.mxu0 0.0
    %431 = vmatpush1.msra.mxu0 0.0
    %432 = vmatprep.subr.mxu0 0.0
    %433 = vmatpush1.msra.mxu0 0.0
    %434 = vmatprep.subr.mxu0 0.0
    %435 = vmatpush1.msra.mxu0 0.0
    %436 = vmatprep.subr.mxu0 0.0
    %437 = vmatpush1.msra.mxu0 0.0
    %438 = vmatprep.subr.mxu0 0.0
    %439 = vmatpush1.msra.mxu0 0.0
    %440 = vmatprep.subr.mxu0 0.0
    %441 = vmatpush1.msra.mxu0 0.0
    %442 = vmatprep.subr.mxu0 0.0
    %443 = vmatpush1.msra.mxu0 0.0
    %444 = vmatprep.subr.mxu0 0.0
    %445 = vmatpush1.msra.mxu0 0.0
    %446 = vmatprep.subr.mxu0 0.0
    %447 = vmatpush1.msra.mxu0 %v107
    %448 = vmatprep.subr.mxu0 0.0
    %449 = vmatpush1.msra.mxu0 %v106
    %450 = vmatprep.subr.mxu0 0.0
    %451 = vmatpush1.msra.mxu0 %v105
    %452 = vmatprep.subr.mxu0 0.0
    %453 = vmatpush1.msra.mxu0 %v104
    %454 = vmatprep.subr.mxu0 0.0
    %455 = vmatpush1.msra.mxu0 %v103
    %456 = vmatprep.subr.mxu0 0.0
    %457 = vmatpush1.msra.mxu0 %v102
    %458 = vmatprep.subr.mxu0 0.0
    %459 = vmatpush1.msra.mxu0 %v101
    %460 = vmatprep.subr.mxu0 0.0
    %461 = vmatpush1.msra.mxu0 %v100
    %462 = vmatprep.subr.mxu0 0.0
    %463 = vmatpush2.msra.mxu0 0.0
    %464 = vmatprep.subr.mxu0 0.0
    %465 = vmatpush2.msra.mxu0 0.0
    %466 = vmatprep.subr.mxu0 0.0
    %467 = vmatpush2.msra.mxu0 0.0
    %468 = vmatprep.subr.mxu0 0.0
    %469 = vmatpush2.msra.mxu0 0.0
    %470 = vmatprep.subr.mxu0 0.0
    %471 = vmatpush2.msra.mxu0 0.0
    %472 = vmatprep.subr.mxu0 0.0
    %473 = vmatpush2.msra.mxu0 0.0
    %474 = vmatprep.subr.mxu0 0.0
    %475 = vmatpush2.msra.mxu0 0.0
    %476 = vmatprep.subr.mxu0 0.0
    %477 = vmatpush2.msra.mxu0 0.0
    %478 = vmatprep.subr.mxu0 0.0
    %479 = vmatpush2.msra.mxu0 0.0
    %480 = vmatprep.subr.mxu0 0.0
    %481 = vmatpush2.msra.mxu0 0.0
    %482 = vmatprep.subr.mxu0 0.0
    %483 = vmatpush2.msra.mxu0 0.0
    %484 = vmatprep.subr.mxu0 0.0
    %485 = vmatpush2.msra.mxu0 0.0
    %486 = vmatprep.subr.mxu0 0.0
    %487 = vmatpush2.msra.mxu0 0.0
    %488 = vmatprep.subr.mxu0 0.0
    %489 = vmatpush2.msra.mxu0 0.0
    %490 = vmatprep.subr.mxu0 0.0
    %491 = vmatpush2.msra.mxu0 0.0
    %492 = vmatprep.subr.mxu0 0.0
    %493 = vmatpush2.msra.mxu0 0.0
    %494 = vmatprep.mubr.f32.mxu0 0.0
    %495 = vmatmul.mubr.f32.gmra.mxu0 %v428
    %v496 = vpop.f32.mrf.mxu0
    %v497 = vadd.f32 %v74, %v496
    %v498 = vpop.f32.mrf.mxu0
    %499 = vdwg.mxu0
    %vm500 = vcmask 319488
    %v501 = vsel %vm500, %v497, -inf
    %502 = vmax.xlane.f32.xlu0 %v501
    %v503 = vpop.xlane.xlu0 %502
    %v504 = vsub.f32 %v497, %v503
    %v505 = vmul.f32 %v504, 1.442695
    %v506 = vpow.pop %v505
    %v507 = vsel %vm500, %v506, 0.0
    %508 = vadd.xlane.f32.xlu0 %v507
    %v509 = vpop.xlane.xlu0 %508
    %v510 = vlog2.pop %v509
    %v511 = vmul.f32 %v510, 0.6931472
    %v512 = vsub.f32 %v504, %v511
    %v513 = vlaneseq
    %v514 = vshrl.u32 %v513, 7
    %vm515 = vcmp.eq.s32.totalorder %v514, %v391
    %v516 = vsel %vm515, %v224, 0.0
    %vm517 = vcmask 64512
    %v518 = vsel %vm517, %v516, 0.0
    %v519 = vrot.slane %v518, 4
    %v520 = vadd.f32 %v518, %v519
    %v521 = vrot.slane %v520, 2
    %v522 = vadd.f32 %v520, %v521
    %v523 = vrot.slane %v522, 1
    %v524 = vadd.f32 %v522, %v523
    %vm525 = vcmask 326656
    %v526 = vsel %vm525, %v512, 0.0
    %v527 = vsel %vm116, %v424, 0.0
    %529 = vrot.lane.b32.xlu0 %v415, 96
    %v530 = vpop.permute.xlu0 %529
    %v532 = vsel %vm116, %v530, 0.0
    %v533 = vsel %vm517, %v524, 0.0
    %v535 = vrot.slane %v527, 7
    %v538 = vrot.slane %v532, 6
    %v541 = vrot.slane %v533, 5
    %vm543 = vcmask 1040384
    %v544 = vsel %vm543, %v526, %v535
    %vm545 = vcmask 1041408
    %v546 = vsel %vm545, %v544, %v538
    %vm547 = vcmask 1042432
    %v548 = vsel %vm547, %v546, %v541
    %vm549 = vcmask 1043456
    %v550 = vsel %vm549, %v548, 0.0
    %551 = vst [vmem:[#allocation10] sm:$0xff] %v550
    // Predicated region
    $region34: #{tpu_custom_call.1} parent=1 // pred_check
      _
    $region35: #{tpu_custom_call.1} parent=1 // pred_check_branch
      %553 = sbr.rel (0) target = $region37
    $region36: #{tpu_custom_call.1} parent=1 // pred_region
      %s555 = ssub.s32 128, 128
      %556 = vsyncadd [#allocation4], %s555
      %s558 = sshll.u32 [#allocation10], 4
      %s559 = int_to_ptr.vmem [resolvable:$true] %s558
      %561 = dma.vmem_to_hbm [thread:$0]  %s559, 128, %s4, [#allocation4]
    $region37: #{tpu_custom_call.1} parent=1 // pred_fallthru
      _
    // Predicated region
    $region38: #{tpu_custom_call.1} parent=1 // pred_check
      _
    $region39: #{tpu_custom_call.1} parent=1 // pred_check_branch
      %563 = sbr.rel (0) target = $region41
    $region40: #{tpu_custom_call.1} parent=1 // pred_region
      %564 = dma.done [#allocation4], 128
    $region41: #{tpu_custom_call.1} parent=1 // pred_fallthru
      _
    %565 = vsyncpa [#allocation3], 1
    %566 = vsyncpa [#allocation6], 1
    %567 = vsyncpa [#allocation9], 1
    %568 = vsyncpa [#allocation4], 1

</llo_original>
